<compile_context>
chip_gen: v7x
topology: tpu7x:2x2x1
jax: 0.10.0
libtpu: 0.0.40
codegen_flags: <defaults>
</compile_context>

<pallas_src>
import functools

import numpy as np
import jax
import jax.numpy as jnp
from jax import lax
from jax.experimental import pallas as pl
from jax.experimental.pallas import tpu as pltpu

# ---- deterministic "config" (CenterLoss.__init__ parameters) ----------------
SIGMA = 1.0        # config['hdr_ff_sigma']
EPS = 1e-3         # config['hdr_eps']
FACTOR = 0.5       # config['hdr_ff_factor']
MIN_SAMPLE = 32    # config['min_sample']
N_BANDS = 2


def _band_thresholds(n_bands):
    # Radial-mask thresholds used by the band-sampling loop (compared against dist^2,
    # exactly like the torch reference):
    #   masking_dist=1 -> (0.1, 1/n];  masking_dist=d>1 -> ((d-1)/n, d/n]
    ts = [0.1] + [k / n_bands for k in range(1, n_bands + 1)]
    assert all(ts[i] < ts[i + 1] for i in range(len(ts) - 1)), "thresholds must be increasing"
    return tuple(ts)


BAND_THRESHOLDS = _band_thresholds(N_BANDS)


def _pick_tile_rows(R, requested):
    """Largest multiple of 32 (int8 (32,128) tiling) that divides R, capped by
    `requested`, preferring >= 2 grid blocks so v7x's two TensorCores both get work."""
    cap = min(requested, R)
    divisors = [tr for tr in range(32, cap + 1, 32) if R % tr == 0]
    if not divisors:
        # Fallback: one full-extent block (block dims equal to the array dims are
        # always legal).  TODO(synk): tail masking for awkward N instead of one block.
        return R
    tr = max(divisors)
    if tr == R:
        smaller = [d for d in divisors if d <= R // 2]
        if smaller:
            tr = max(smaller)
    return tr


def _center_loss_kernel(in_ref, tg_ref, kc_ref, pair2_ref, pair3_ref,
                        psum_ref, band_ref, *, sigma, eps, thresholds):
    # in_ref / tg_ref : (tr, 256) f32, lanes 2k / 2k+1 = re / im of sample k.
    # kc_ref          : (tr, 384) f32, lanes 3k+0/1/2 = kz / ky / kx of sample k.
    # pair2           : (256, 128) 0/1 constant, pair2[i, j] = 1 iff i // 2 == j.
    # pair3           : (384, 128) 0/1 constant, pair3[i, j] = 1 iff i in {3j+1, 3j+2}.
    x = in_ref[...]
    t = tg_ref[...]
    kc = kc_ref[...]
    pair2 = pair2_ref[...]
    pair3 = pair3_ref[...]

    # Pairwise lane compaction on the (otherwise idle) MXU: interleaved squares ->
    # per-sample (tr, 128) planes.  Weights are exactly 0/1 so this reproduces
    # re^2 + im^2 / ky^2 + kx^2 with no cross-lane VPU/XLU shuffles.
    err = x - t
    in_abs2 = jnp.dot(x * x, pair2, preferred_element_type=jnp.float32)
    err_abs2 = jnp.dot(err * err, pair2, preferred_element_type=jnp.float32)
    dist2 = jnp.dot(kc * kc, pair3, preferred_element_type=jnp.float32)

    # error_loss == abs_loss == |input - target|^2 / (|input| + eps)^2
    inv = pl.reciprocal(jnp.sqrt(in_abs2) + eps, approx=True)
    inv2 = inv * inv
    err_terms = err_abs2 * inv2
    r2_terms = in_abs2 * inv2                       # (|input| / (|input| + eps))^2

    # filter_value = exp(-dist2 / (2 sigma^2));  reg i-factor = (1 - filter_value)^2
    filt = jnp.exp(dist2 * (-1.0 / (2.0 * sigma * sigma)))
    omf = 1.0 - filt
    f2_terms = omf * omf

    # Per-lane partial sums (sublane reduction only); the lane reduction and the
    # final loss arithmetic happen in the jitted wrapper.  Rows 0..2 of the
    # (1, 8, 128) tile carry err / (1-filt)^2 / ratio^2 partials.
    e = jnp.sum(err_terms, axis=0, keepdims=True)[None]   # (1, 1, 128)
    f = jnp.sum(f2_terms, axis=0, keepdims=True)[None]
    r = jnp.sum(r2_terms, axis=0, keepdims=True)[None]
    rows = lax.broadcasted_iota(jnp.int32, (1, 8, 128), 1)
    tile = jnp.where(rows == 0, e, 0.0)
    tile = jnp.where(rows == 1, f, tile)
    tile = jnp.where(rows == 2, r, tile)
    psum_ref[...] = tile

    # Band index = number of radial thresholds exceeded by dist2 (0..3), as int8.
    band = jnp.zeros(dist2.shape, dtype=jnp.int32)
    for thr in thresholds:                          # static unroll: 3 compares + adds
        band = band + (dist2 > thr).astype(jnp.int32)
    band_ref[...] = band.astype(jnp.int8)


@functools.partial(jax.jit, static_argnames=("tile_rows",))
def _device_forward(inp, target, kcoords, *, tile_rows=1024):
    N = inp.shape[0]
    if N % 128 != 0:
        # TODO(synk): tail masking for N not a multiple of 128.
        raise ValueError("N must be a multiple of 128")
    R = N // 128
    tr = _pick_tile_rows(R, tile_rows)
    num_blocks = R // tr

    # Free (metadata-only) reshapes: interleaved samples are consumed directly by the
    # kernel — no de-interleave slab round trip through HBM.
    inp32 = inp.astype(jnp.float32).reshape(R, 256)
    tgt32 = target.astype(jnp.float32).reshape(R, 256)
    kc32 = kcoords.astype(jnp.float32).reshape(R, 384)

    # Constant 0/1 pairing matrices (tiny, resident in VMEM across the whole grid).
    jj = jnp.arange(128, dtype=jnp.int32)[None, :]
    i2 = jnp.arange(256, dtype=jnp.int32)[:, None]
    i3 = jnp.arange(384, dtype=jnp.int32)[:, None]
    pair2 = ((i2 // 2) == jj).astype(jnp.float32)
    pair3 = (((i3 // 3) == jj) & ((i3 % 3) != 0)).astype(jnp.float32)

    kernel = functools.partial(_center_loss_kernel, sigma=SIGMA, eps=EPS,
                               thresholds=BAND_THRESHOLDS)

    psums, band = pl.pallas_call(
        kernel,
        out_shape=(
            jax.ShapeDtypeStruct((num_blocks, 8, 128), jnp.float32),  # per-block partials
            jax.ShapeDtypeStruct((R, 128), jnp.int8),                 # band index
        ),
        grid=(num_blocks,),
        in_specs=[
            pl.BlockSpec((tr, 256), lambda i: (i, 0)),
            pl.BlockSpec((tr, 256), lambda i: (i, 0)),
            pl.BlockSpec((tr, 384), lambda i: (i, 0)),
            pl.BlockSpec((256, 128), lambda i: (0, 0)),
            pl.BlockSpec((384, 128), lambda i: (0, 0)),
        ],
        out_specs=(
            pl.BlockSpec((1, 8, 128), lambda i: (i, 0, 0)),
            pl.BlockSpec((tr, 128), lambda i: (i, 0)),
        ),
        compiler_params=pltpu.CompilerParams(
            dimension_semantics=("parallel",)),
    )(inp32, tgt32, kc32, pair2, pair3)

    err_sum = jnp.sum(psums[:, 0, :])
    f2_sum = jnp.sum(psums[:, 1, :])
    r2_sum = jnp.sum(psums[:, 2, :])

    n_f = jnp.float32(N)
    error_loss_mean = err_sum / n_f            # == abs_loss.mean() (identical expressions)
    # reg[i, j] = factor * ((1 - filt[i]) * |input[j]| / (|input[j]| + eps))**2 ;
    # the (N, N) broadcast mean is separable into the product of global sums.
    reg_mean = FACTOR * f2_sum * r2_sum / (n_f * n_f)
    base = 0.1 * error_loss_mean + 0.9 * (error_loss_mean + reg_mean)
    return base, band


def center_loss_forward(inp, target, kcoords, *, tile_rows=1024):
    """Forward pass of CenterLoss.  Returns (loss[1], 0) like the torch module."""
    base, band = _device_forward(inp, target, kcoords, tile_rows=tile_rows)

    # ---- center_loss: band masking + random sampling (data-dependent shapes) ----
    # Only the int8 band map (N bytes) crosses to the host; the <= 2*min_sample
    # magnitudes per band are gathered from the original f32 arrays on device.
    # TODO(synk): torch.randperm's RNG stream cannot be reproduced in JAX/numpy;
    # a deterministic numpy Generator(seed=0) drives the permutations instead.
    band_np = np.asarray(jax.device_get(band), dtype=np.int32).reshape(-1)

    rng = np.random.default_rng(0)
    center_loss = 0.0
    for masking_dist in range(1, N_BANDS + 1):
        low_idx = masking_dist - 1     # threshold index of masking_ratio (0.1 for band 1)
        high_idx = masking_dist        # threshold index of masking_ratio_2
        mask_1 = band_np <= low_idx
        mask_2 = (band_np <= high_idx) & ~mask_1
        idx1 = np.flatnonzero(mask_1)
        idx2 = np.flatnonzero(mask_2)
        n = int(min(MIN_SAMPLE, idx1.size, idx2.size))
        if n == 0:
            continue
        a = rng.permutation(idx1.size)[:n]
        b = rng.permutation(idx2.size)[:n]
        sel = jnp.asarray(np.concatenate([idx1[a], idx2[b]]))
        g_in, g_tg = jax.device_get((jnp.take(inp, sel, axis=0),
                                     jnp.take(target, sel, axis=0)))
        abs_in = np.hypot(g_in[:, 0], g_in[:, 1])
        abs_tg = np.hypot(g_tg[:, 0], g_tg[:, 1])
        diff_pred = abs_in[:n] - abs_in[n:]
        diff_gt = abs_tg[:n] - abs_tg[n:]
        center_loss += float(np.mean((diff_gt - diff_pred) ** 2))

    loss = jnp.reshape(base + 0.1 * jnp.float32(center_loss), (1,))
    return loss, 0


if __name__ == "__main__":
    key = jax.random.PRNGKey(0)
    k1, k2, k3 = jax.random.split(key, 3)
    N = 16384  # 128 sample-rows of 128 lanes -> auto tile picks 64 rows x 2 blocks
    inp = jax.random.normal(k1, (N, 2), dtype=jnp.float32)
    target = jax.random.normal(k2, (N, 2), dtype=jnp.float32)
    kcoords = jax.random.uniform(k3, (N, 3), dtype=jnp.float32, minval=-1.0, maxval=1.0)

    loss, aux = center_loss_forward(inp, target, kcoords)
    loss = jax.block_until_ready(loss)
    assert loss.shape == (1,) and bool(jnp.isfinite(loss).all())
    assert aux == 0
    print("KERNEL_OK")
</pallas_src>

<mosaic_0001>
module attributes {stable_mosaic.version = 11 : i64} {
  func.func @_center_loss_kernel(%arg0: i32, %arg1: memref<64x256xf32, #tpu.memory_space<vmem>>, %arg2: memref<64x256xf32, #tpu.memory_space<vmem>>, %arg3: memref<64x384xf32, #tpu.memory_space<vmem>>, %arg4: memref<256x128xf32, #tpu.memory_space<vmem>>, %arg5: memref<384x128xf32, #tpu.memory_space<vmem>>, %arg6: memref<1x8x128xf32, #tpu.memory_space<vmem>>, %arg7: memref<64x128xi8, #tpu.memory_space<vmem>>) attributes {dimension_semantics = [#tpu.dimension_semantics<parallel>], iteration_bounds = array<i64: 2>, scalar_prefetch = 0 : i64, scratch_operands = 0 : i64, tpu.core_type = #tpu.core_type<tc>, window_params = [{transform_indices = @transform_0, window_bounds = array<i64: 64, 256>}, {transform_indices = @transform_1, window_bounds = array<i64: 64, 256>}, {transform_indices = @transform_2, window_bounds = array<i64: 64, 384>}, {pipeline_mode = #tpu.pipeline_mode<synchronous>, transform_indices = @transform_3, window_bounds = array<i64: 256, 128>}, {pipeline_mode = #tpu.pipeline_mode<synchronous>, transform_indices = @transform_4, window_bounds = array<i64: 384, 128>}, {transform_indices = @transform_5, window_bounds = array<i64: 1, 8, 128>}, {transform_indices = @transform_6, window_bounds = array<i64: 64, 128>}]} {
    %c0 = arith.constant 0 : index
    %c0_0 = arith.constant 0 : index
    %0 = vector.load %arg1[%c0, %c0_0] : memref<64x256xf32, #tpu.memory_space<vmem>>, vector<64x256xf32>
    %c0_1 = arith.constant 0 : index
    %c0_2 = arith.constant 0 : index
    %1 = vector.load %arg2[%c0_1, %c0_2] : memref<64x256xf32, #tpu.memory_space<vmem>>, vector<64x256xf32>
    %c0_3 = arith.constant 0 : index
    %c0_4 = arith.constant 0 : index
    %2 = vector.load %arg3[%c0_3, %c0_4] : memref<64x384xf32, #tpu.memory_space<vmem>>, vector<64x384xf32>
    %c0_5 = arith.constant 0 : index
    %c0_6 = arith.constant 0 : index
    %3 = vector.load %arg4[%c0_5, %c0_6] : memref<256x128xf32, #tpu.memory_space<vmem>>, vector<256x128xf32>
    %c0_7 = arith.constant 0 : index
    %c0_8 = arith.constant 0 : index
    %4 = vector.load %arg5[%c0_7, %c0_8] : memref<384x128xf32, #tpu.memory_space<vmem>>, vector<384x128xf32>
    %5 = arith.subf %0, %1 : vector<64x256xf32>
    %6 = arith.mulf %0, %0 : vector<64x256xf32>
    %cst = arith.constant dense<0.000000e+00> : vector<64x128xf32>
    %7 = tpu.matmul %6, %3, %cst {dimension_numbers = #tpu.dot_dimension_numbers<[1], [0], [0], [1], [0, 0, 1, 1], [], []>} : vector<64x256xf32>, vector<256x128xf32>, vector<64x128xf32> -> vector<64x128xf32>
    %8 = arith.mulf %5, %5 : vector<64x256xf32>
    %cst_9 = arith.constant dense<0.000000e+00> : vector<64x128xf32>
    %9 = tpu.matmul %8, %3, %cst_9 {dimension_numbers = #tpu.dot_dimension_numbers<[1], [0], [0], [1], [0, 0, 1, 1], [], []>} : vector<64x256xf32>, vector<256x128xf32>, vector<64x128xf32> -> vector<64x128xf32>
    %10 = arith.mulf %2, %2 : vector<64x384xf32>
    %cst_10 = arith.constant dense<0.000000e+00> : vector<64x128xf32>
    %11 = tpu.matmul %10, %4, %cst_10 {dimension_numbers = #tpu.dot_dimension_numbers<[1], [0], [0], [1], [0, 0, 1, 1], [], []>} : vector<64x384xf32>, vector<384x128xf32>, vector<64x128xf32> -> vector<64x128xf32>
    %12 = math.sqrt %7 : vector<64x128xf32>
    %cst_11 = arith.constant 1.000000e-03 : f32
    %13 = vector.broadcast %cst_11 : f32 to vector<64x128xf32>
    %14 = arith.addf %12, %13 : vector<64x128xf32>
    %15 = tpu.reciprocal %14 {approx = true} : vector<64x128xf32> -> vector<64x128xf32>
    %16 = arith.mulf %15, %15 : vector<64x128xf32>
    %17 = arith.mulf %9, %16 : vector<64x128xf32>
    %18 = arith.mulf %7, %16 : vector<64x128xf32>
    %cst_12 = arith.constant -5.000000e-01 : f32
    %19 = vector.broadcast %cst_12 : f32 to vector<64x128xf32>
    %20 = arith.mulf %11, %19 : vector<64x128xf32>
    %21 = math.exp %20 : vector<64x128xf32>
    %cst_13 = arith.constant 1.000000e+00 : f32
    %22 = vector.broadcast %cst_13 : f32 to vector<64x128xf32>
    %23 = arith.subf %22, %21 : vector<64x128xf32>
    %24 = arith.mulf %23, %23 : vector<64x128xf32>
    %cst_14 = arith.constant dense<0.000000e+00> : vector<128xf32>
    %25 = vector.multi_reduction <add>, %17, %cst_14 [0] : vector<64x128xf32> to vector<128xf32>
    %26 = vector.shape_cast %25 : vector<128xf32> to vector<1x128xf32>
    %27 = vector.shape_cast %26 : vector<1x128xf32> to vector<1x1x128xf32>
    %cst_15 = arith.constant dense<0.000000e+00> : vector<128xf32>
    %28 = vector.multi_reduction <add>, %24, %cst_15 [0] : vector<64x128xf32> to vector<128xf32>
    %29 = vector.shape_cast %28 : vector<128xf32> to vector<1x128xf32>
    %30 = vector.shape_cast %29 : vector<1x128xf32> to vector<1x1x128xf32>
    %cst_16 = arith.constant dense<0.000000e+00> : vector<128xf32>
    %31 = vector.multi_reduction <add>, %18, %cst_16 [0] : vector<64x128xf32> to vector<128xf32>
    %32 = vector.shape_cast %31 : vector<128xf32> to vector<1x128xf32>
    %33 = vector.shape_cast %32 : vector<1x128xf32> to vector<1x1x128xf32>
    %34 = tpu.iota {dimensions = array<i32: 1>} : vector<1x8x128xi32>
    %c0_i32 = arith.constant 0 : i32
    %35 = vector.broadcast %c0_i32 : i32 to vector<1x8x128xi32>
    %36 = arith.cmpi eq, %34, %35 : vector<1x8x128xi32>
    %cst_17 = arith.constant 0.000000e+00 : f32
    %37 = vector.shape_cast %27 : vector<1x1x128xf32> to vector<1x1x128xf32>
    %38 = vector.broadcast %37 : vector<1x1x128xf32> to vector<1x8x128xf32>
    %39 = vector.broadcast %cst_17 : f32 to vector<1x8x128xf32>
    %40 = arith.select %36, %38, %39 : vector<1x8x128xi1>, vector<1x8x128xf32>
    %c1_i32 = arith.constant 1 : i32
    %41 = vector.broadcast %c1_i32 : i32 to vector<1x8x128xi32>
    %42 = arith.cmpi eq, %34, %41 : vector<1x8x128xi32>
    %43 = vector.shape_cast %30 : vector<1x1x128xf32> to vector<1x1x128xf32>
    %44 = vector.broadcast %43 : vector<1x1x128xf32> to vector<1x8x128xf32>
    %45 = arith.select %42, %44, %40 : vector<1x8x128xi1>, vector<1x8x128xf32>
    %c2_i32 = arith.constant 2 : i32
    %46 = vector.broadcast %c2_i32 : i32 to vector<1x8x128xi32>
    %47 = arith.cmpi eq, %34, %46 : vector<1x8x128xi32>
    %48 = vector.shape_cast %33 : vector<1x1x128xf32> to vector<1x1x128xf32>
    %49 = vector.broadcast %48 : vector<1x1x128xf32> to vector<1x8x128xf32>
    %50 = arith.select %47, %49, %45 : vector<1x8x128xi1>, vector<1x8x128xf32>
    %c0_18 = arith.constant 0 : index
    %c0_19 = arith.constant 0 : index
    %c0_20 = arith.constant 0 : index
    %51 = vector.load %arg6[%c0_18, %c0_19, %c0_20] : memref<1x8x128xf32, #tpu.memory_space<vmem>>, vector<1x8x128xf32>
    tpu.vector_store %arg6[%c0_18, %c0_19, %c0_20], %50 {strides = array<i32>} : memref<1x8x128xf32, #tpu.memory_space<vmem>>, vector<1x8x128xf32>,
    %c0_i32_21 = arith.constant 0 : i32
    %52 = vector.broadcast %c0_i32_21 : i32 to vector<64x128xi32>
    %cst_22 = arith.constant 1.000000e-01 : f32
    %53 = vector.broadcast %cst_22 : f32 to vector<64x128xf32>
    %54 = arith.cmpf ogt, %11, %53 : vector<64x128xf32>
    %55 = arith.extui %54 : vector<64x128xi1> to vector<64x128xi32>
    %56 = arith.addi %52, %55 : vector<64x128xi32>
    %cst_23 = arith.constant 5.000000e-01 : f32
    %57 = vector.broadcast %cst_23 : f32 to vector<64x128xf32>
    %58 = arith.cmpf ogt, %11, %57 : vector<64x128xf32>
    %59 = arith.extui %58 : vector<64x128xi1> to vector<64x128xi32>
    %60 = arith.addi %56, %59 : vector<64x128xi32>
    %cst_24 = arith.constant 1.000000e+00 : f32
    %61 = vector.broadcast %cst_24 : f32 to vector<64x128xf32>
    %62 = arith.cmpf ogt, %11, %61 : vector<64x128xf32>
    %63 = arith.extui %62 : vector<64x128xi1> to vector<64x128xi32>
    %64 = arith.addi %60, %63 : vector<64x128xi32>
    %65 = arith.trunci %64 : vector<64x128xi32> to vector<64x128xi8>
    %c0_25 = arith.constant 0 : index
    %c0_26 = arith.constant 0 : index
    %66 = vector.load %arg7[%c0_25, %c0_26] : memref<64x128xi8, #tpu.memory_space<vmem>>, vector<64x128xi8>
    tpu.vector_store %arg7[%c0_25, %c0_26], %65 {strides = array<i32>} : memref<64x128xi8, #tpu.memory_space<vmem>>, vector<64x128xi8>,
    return
  }
  func.func @transform_0(%arg0: i32) -> (i32, i32) {
    %c0_i32 = arith.constant 0 : i32
    %c0_i32_0 = arith.constant 0 : i32
    return %arg0, %c0_i32 : i32, i32
  }
  func.func @transform_1(%arg0: i32) -> (i32, i32) {
    %c0_i32 = arith.constant 0 : i32
    %c0_i32_0 = arith.constant 0 : i32
    return %arg0, %c0_i32 : i32, i32
  }
  func.func @transform_2(%arg0: i32) -> (i32, i32) {
    %c0_i32 = arith.constant 0 : i32
    %c0_i32_0 = arith.constant 0 : i32
    return %arg0, %c0_i32 : i32, i32
  }
  func.func @transform_3(%arg0: i32) -> (i32, i32) {
    %c0_i32 = arith.constant 0 : i32
    %c0_i32_0 = arith.constant 0 : i32
    %c0_i32_1 = arith.constant 0 : i32
    return %c0_i32, %c0_i32_0 : i32, i32
  }
  func.func @transform_4(%arg0: i32) -> (i32, i32) {
    %c0_i32 = arith.constant 0 : i32
    %c0_i32_0 = arith.constant 0 : i32
    %c0_i32_1 = arith.constant 0 : i32
    return %c0_i32, %c0_i32_0 : i32, i32
  }
  func.func @transform_5(%arg0: i32) -> (i32, i32, i32) {
    %c0_i32 = arith.constant 0 : i32
    %c0_i32_0 = arith.constant 0 : i32
    %c0_i32_1 = arith.constant 0 : i32
    return %arg0, %c0_i32, %c0_i32_0 : i32, i32, i32
  }
  func.func @transform_6(%arg0: i32) -> (i32, i32) {
    %c0_i32 = arith.constant 0 : i32
    %c0_i32_0 = arith.constant 0 : i32
    return %arg0, %c0_i32 : i32, i32
  }
}

</mosaic_0001>

<llo_original>
// kernel: _device_forward.1
$region0: #{_device_forward.1}
  #allocation0 [shape = 'u32[]', space=smem, size = 0x4, offset = 0x4, fixed_abs, tag = 'smem constant byte address 0x4 - core index']
  #allocation1 [shape = 'u32[144,128]{1,0:T(1,128)}', space=vmem, size = 0x12000, scoped, tag = 'internal scratch']
  %s0 = inlined_call_operand.vmem [shape: f32[128,256], index: 0, kind: input, shape index: {}]
  %s1 = inlined_call_operand.vmem [shape: f32[128,256], index: 1, kind: input, shape index: {}]
  %s2 = inlined_call_operand.vmem [shape: f32[128,384], index: 2, kind: input, shape index: {}]
  %s3 = inlined_call_operand.vmem [shape: f32[256,128], index: 3, kind: input, shape index: {}]
  %s4 = inlined_call_operand.vmem [shape: f32[384,128], index: 4, kind: input, shape index: {}]
  %s5 = inlined_call_operand.vmem [shape: f32[2,8,128], index: 5, kind: output, shape index: {0}]
  %s6 = inlined_call_operand.hbm [shape: s8[128,128], index: 6, kind: output, shape index: {1}]
  %7 = xla_tuple %s5, %s6
  %s8 = sld [smem:[#allocation0]]
  $region61: #{_device_forward.1} parent=0
    _
  %s10 = ssub.s32 1, %s8
  %s11 = scalar_select 0, %s10, %s8
  $region1: #{_device_forward.1} parent=0
    #allocation2 [shape = 'u8[16384]{0}', space=vmem, size = 0x4000, scoped, tag = 'output window, operand 1']
    #allocation3 [shape = 's32[2]{0}', space=sflag, size = 0x8, scoped, tag = 'scoped memory for _device_forward.1']
    %12 = vsyncpa [#allocation3], 0
    %s13 = scalar_lea.sflag [#allocation3], 1
    %14 = vsyncpa %s13, 0
    loop: start=0, step=1, limit=4
    $region2: #{_device_forward.1} parent=1 // loop_pre_header
      _
    $region3: #{_device_forward.1} parent=1 // loop_header
      %s16 = sphi 0, %s20
      %p17 = scmp.ge.s32.totalorder %s16, 4
      %s26 = sphi 0, %s28
      %s29 = sphi 0, %s26
      %s30 = sphi 0, %s29
      %s46 = sphi 0, %s30
      %s52 = sphi 0, %s54
      %s55 = sphi 0, %s52
      %s56 = sphi 0, %s55
      %s72 = sphi 0, %s56
      %s78 = sphi 0, %s80
      %s81 = sphi 0, %s78
      %s82 = sphi 0, %s81
      %s98 = sphi 0, %s82
      %s102 = sphi 0, %s102
      %s104 = sphi 0, %s102
      %s105 = sphi 0, %s104
      %s119 = sphi 0, %s105
      %s123 = sphi 0, %s123
      %s125 = sphi 0, %s123
      %s126 = sphi 0, %s125
      %s140 = sphi 0, %s126
      %s146 = sphi 0, %s148
      %s149 = sphi 0, %s146
      %s150 = sphi 0, %s149
      %s166 = sphi 0, %s150
      %s172 = sphi 0, %s174
      %s175 = sphi 0, %s172
      %s176 = sphi 0, %s175
      %s192 = sphi 0, %s176
    $region4: #{_device_forward.1} parent=1 // loop_header_branch
      %19 = sbr.rel (%p17) target = $region8
    $region5: #{_device_forward.1} parent=1 // loop_body
      %s21 = ssub.s32 %s16, 1
      %s22 = ssub.s32 %s16, 2
      %s23 = sadd.s32 %s16, 1
      %s24 = ssub.s32 %s16, %s23
      %p25 = scmp.eq.s32.totalorder %s24, 0
      %s27 = sadd.s32 %s26, 1
      %s28 = scalar_select %p25, %s26, %s27
      %p31 = pneg %p25
      %p32 = scmp.eq.s32.totalorder %s16, 1
      %p33 = por %p31, %p32
      %p34 = scmp.ne.s32.totalorder %s26, %s29
      %p35 = scmp.eq.s32.totalorder %s16, 0
      %p36 = por %p34, %p35
      %p37 = scmp.ne.s32.totalorder %s26, %s29
      %p38 = scmp.eq.s32.totalorder %s21, 1
      %p39 = por %p37, %p38
      %p40 = scmp.ne.s32.totalorder %s29, %s30
      %p41 = scmp.eq.s32.totalorder %s21, 0
      %p42 = por %p40, %p41
      %p43 = scmp.ne.s32.totalorder %s29, %s30
      %p44 = scmp.eq.s32.totalorder %s22, 1
      %p45 = por %p43, %p44
      %p47 = scmp.ne.s32.totalorder %s30, %s46
      %p48 = scmp.eq.s32.totalorder %s22, 0
      %p49 = por %p47, %p48
      %s50 = ssub.s32 %s16, %s23
      %p51 = scmp.eq.s32.totalorder %s50, 0
      %s53 = sadd.s32 %s52, 1
      %s54 = scalar_select %p51, %s52, %s53
      %p57 = pneg %p51
      %p58 = scmp.eq.s32.totalorder %s16, 1
      %p59 = por %p57, %p58
      %p60 = scmp.ne.s32.totalorder %s52, %s55
      %p61 = scmp.eq.s32.totalorder %s16, 0
      %p62 = por %p60, %p61
      %p63 = scmp.ne.s32.totalorder %s52, %s55
      %p64 = scmp.eq.s32.totalorder %s21, 1
      %p65 = por %p63, %p64
      %p66 = scmp.ne.s32.totalorder %s55, %s56
      %p67 = scmp.eq.s32.totalorder %s21, 0
      %p68 = por %p66, %p67
      %p69 = scmp.ne.s32.totalorder %s55, %s56
      %p70 = scmp.eq.s32.totalorder %s22, 1
      %p71 = por %p69, %p70
      %p73 = scmp.ne.s32.totalorder %s56, %s72
      %p74 = scmp.eq.s32.totalorder %s22, 0
      %p75 = por %p73, %p74
      %s76 = ssub.s32 %s16, %s23
      %p77 = scmp.eq.s32.totalorder %s76, 0
      %s79 = sadd.s32 %s78, 1
      %s80 = scalar_select %p77, %s78, %s79
      %p83 = pneg %p77
      %p84 = scmp.eq.s32.totalorder %s16, 1
      %p85 = por %p83, %p84
      %p86 = scmp.ne.s32.totalorder %s78, %s81
      %p87 = scmp.eq.s32.totalorder %s16, 0
      %p88 = por %p86, %p87
      %p89 = scmp.ne.s32.totalorder %s78, %s81
      %p90 = scmp.eq.s32.totalorder %s21, 1
      %p91 = por %p89, %p90
      %p92 = scmp.ne.s32.totalorder %s81, %s82
      %p93 = scmp.eq.s32.totalorder %s21, 0
      %p94 = por %p92, %p93
      %p95 = scmp.ne.s32.totalorder %s81, %s82
      %p96 = scmp.eq.s32.totalorder %s22, 1
      %p97 = por %p95, %p96
      %p99 = scmp.ne.s32.totalorder %s82, %s98
      %p100 = scmp.eq.s32.totalorder %s22, 0
      %p101 = por %p99, %p100
      %s103 = sadd.s32 %s102, 1
      %p106 = scmp.eq.s32.totalorder %s16, 1
      %p107 = scmp.ne.s32.totalorder %s102, %s104
      %p108 = scmp.eq.s32.totalorder %s16, 0
      %p109 = por %p107, %p108
      %p110 = scmp.ne.s32.totalorder %s102, %s104
      %p111 = scmp.eq.s32.totalorder %s21, 1
      %p112 = por %p110, %p111
      %p113 = scmp.ne.s32.totalorder %s104, %s105
      %p114 = scmp.eq.s32.totalorder %s21, 0
      %p115 = por %p113, %p114
      %p116 = scmp.ne.s32.totalorder %s104, %s105
      %p117 = scmp.eq.s32.totalorder %s22, 1
      %p118 = por %p116, %p117
      %p120 = scmp.ne.s32.totalorder %s105, %s119
      %p121 = scmp.eq.s32.totalorder %s22, 0
      %p122 = por %p120, %p121
      %s124 = sadd.s32 %s123, 1
      %p127 = scmp.eq.s32.totalorder %s16, 1
      %p128 = scmp.ne.s32.totalorder %s123, %s125
      %p129 = scmp.eq.s32.totalorder %s16, 0
      %p130 = por %p128, %p129
      %p131 = scmp.ne.s32.totalorder %s123, %s125
      %p132 = scmp.eq.s32.totalorder %s21, 1
      %p133 = por %p131, %p132
      %p134 = scmp.ne.s32.totalorder %s125, %s126
      %p135 = scmp.eq.s32.totalorder %s21, 0
      %p136 = por %p134, %p135
      %p137 = scmp.ne.s32.totalorder %s125, %s126
      %p138 = scmp.eq.s32.totalorder %s22, 1
      %p139 = por %p137, %p138
      %p141 = scmp.ne.s32.totalorder %s126, %s140
      %p142 = scmp.eq.s32.totalorder %s22, 0
      %p143 = por %p141, %p142
      %s144 = ssub.s32 %s16, %s23
      %p145 = scmp.eq.s32.totalorder %s144, 0
      %s147 = sadd.s32 %s146, 1
      %s148 = scalar_select %p145, %s146, %s147
      %p151 = pneg %p145
      %p152 = scmp.eq.s32.totalorder %s16, 1
      %p153 = por %p151, %p152
      %p154 = scmp.ne.s32.totalorder %s146, %s149
      %p155 = scmp.eq.s32.totalorder %s16, 0
      %p156 = por %p154, %p155
      %p157 = scmp.ne.s32.totalorder %s146, %s149
      %p158 = scmp.eq.s32.totalorder %s21, 1
      %p159 = por %p157, %p158
      %p160 = scmp.ne.s32.totalorder %s149, %s150
      %p161 = scmp.eq.s32.totalorder %s21, 0
      %p162 = por %p160, %p161
      %p163 = scmp.ne.s32.totalorder %s149, %s150
      %p164 = scmp.eq.s32.totalorder %s22, 1
      %p165 = por %p163, %p164
      %p167 = scmp.ne.s32.totalorder %s150, %s166
      %p168 = scmp.eq.s32.totalorder %s22, 0
      %p169 = por %p167, %p168
      %s170 = ssub.s32 %s16, %s23
      %p171 = scmp.eq.s32.totalorder %s170, 0
      %s173 = sadd.s32 %s172, 1
      %s174 = scalar_select %p171, %s172, %s173
      %p177 = pneg %p171
      %p178 = scmp.eq.s32.totalorder %s16, 1
      %p179 = por %p177, %p178
      %p180 = scmp.ne.s32.totalorder %s172, %s175
      %p181 = scmp.eq.s32.totalorder %s16, 0
      %p182 = por %p180, %p181
      %p183 = scmp.ne.s32.totalorder %s172, %s175
      %p184 = scmp.eq.s32.totalorder %s21, 1
      %p185 = por %p183, %p184
      %p186 = scmp.ne.s32.totalorder %s175, %s176
      %p187 = scmp.eq.s32.totalorder %s21, 0
      %p188 = por %p186, %p187
      %p189 = scmp.ne.s32.totalorder %s175, %s176
      %p190 = scmp.eq.s32.totalorder %s22, 1
      %p191 = por %p189, %p190
      %p193 = scmp.ne.s32.totalorder %s176, %s192
      %p194 = scmp.eq.s32.totalorder %s22, 0
      %p195 = por %p193, %p194
      %p196 = scmp.le.s32.totalorder 1, %s16
      %p197 = scmp.lt.s32.totalorder %s16, 3
      %p198 = pnand %p196, %p197
      %p199 = pneg %p198
      // Predicated region
      $region9: #{_device_forward.1} parent=5 // pred_check
        _
      $region10: #{_device_forward.1} parent=5 // pred_check_branch
        %201 = sbr.rel (%p198) target = $region12
      $region11: #{_device_forward.1} parent=5 // pred_region
        %s202 = ssub.s32 %s16, 1
        // Predicated region
        $region13: #{_device_forward.1} parent=11 // pred_check
          %p203 = pneg %p115
        $region14: #{_device_forward.1} parent=11 // pred_check_branch
          %205 = sbr.rel (%p203) target = $region16
        $region15: #{_device_forward.1} parent=11 // pred_region
          _
        $region16: #{_device_forward.1} parent=11 // pred_fallthru
          _
        // Predicated region
        $region17: #{_device_forward.1} parent=11 // pred_check
          %p206 = pneg %p136
        $region18: #{_device_forward.1} parent=11 // pred_check_branch
          %208 = sbr.rel (%p206) target = $region20
        $region19: #{_device_forward.1} parent=11 // pred_region
          _
        $region20: #{_device_forward.1} parent=11 // pred_fallthru
          _
      $region12: #{_device_forward.1} parent=5 // pred_fallthru
        _
      %p209 = scmp.lt.s32.totalorder %s16, 2
      // Predicated region
      $region21: #{_device_forward.1} parent=5 // pred_check
        %p210 = pneg %p209
      $region22: #{_device_forward.1} parent=5 // pred_check_branch
        %212 = sbr.rel (%p210) target = $region24
      $region23: #{_device_forward.1} parent=5 // pred_region
        // Predicated region
        $region25: #{_device_forward.1} parent=23 // pred_check
          %p213 = pneg %p36
        $region26: #{_device_forward.1} parent=23 // pred_check_branch
          %215 = sbr.rel (%p213) target = $region28
        $region27: #{_device_forward.1} parent=23 // pred_region
          %s216 = smul.u32 8, %s16
          %p217 = scmp.lt.s32.totalorder %s216, 15
          %s218 = scalar_select %p217, %s216, 15
          %s219 = smul.addr %s218, 2
          %s220 = smul.addr %s219, 8
          %s221 = scalar_lea.vmem %s0, %s220
          %s222 = smul.u32 8, %s16
        $region28: #{_device_forward.1} parent=23 // pred_fallthru
          _
        // Predicated region
        $region29: #{_device_forward.1} parent=23 // pred_check
          %p223 = pneg %p62
        $region30: #{_device_forward.1} parent=23 // pred_check_branch
          %225 = sbr.rel (%p223) target = $region32
        $region31: #{_device_forward.1} parent=23 // pred_region
          %s226 = smul.u32 8, %s16
          %p227 = scmp.lt.s32.totalorder %s226, 15
          %s228 = scalar_select %p227, %s226, 15
          %s229 = smul.addr %s228, 2
          %s230 = smul.addr %s229, 8
          %s231 = scalar_lea.vmem %s1, %s230
          %s232 = smul.u32 8, %s16
        $region32: #{_device_forward.1} parent=23 // pred_fallthru
          _
        // Predicated region
        $region33: #{_device_forward.1} parent=23 // pred_check
          %p233 = pneg %p88
        $region34: #{_device_forward.1} parent=23 // pred_check_branch
          %235 = sbr.rel (%p233) target = $region36
        $region35: #{_device_forward.1} parent=23 // pred_region
          %s236 = smul.u32 8, %s16
          %p237 = scmp.lt.s32.totalorder %s236, 15
          %s238 = scalar_select %p237, %s236, 15
          %s239 = smul.addr %s238, 3
          %s240 = smul.addr %s239, 8
          %s241 = scalar_lea.vmem %s2, %s240
          %s242 = smul.u32 8, %s16
        $region36: #{_device_forward.1} parent=23 // pred_fallthru
          _
      $region24: #{_device_forward.1} parent=5 // pred_fallthru
        _
      %p243 = scmp.le.s32.totalorder 1, %s16
      %p244 = scmp.lt.s32.totalorder %s16, 3
      %p245 = pnand %p243, %p244
      %p246 = pneg %p245
      // Predicated region
      $region37: #{_device_forward.1} parent=5 // pred_check
        _
      $region38: #{_device_forward.1} parent=5 // pred_check_branch
        %248 = sbr.rel (%p245) target = $region40
      $region39: #{_device_forward.1} parent=5 // pred_region
        %s249 = ssub.s32 %s16, 1
        %s250 = smul.u32 8, %s21
        %p251 = scmp.lt.s32.totalorder %s250, 15
        %s252 = scalar_select %p251, %s250, 15
        %s253 = smul.addr %s252, 2
        %s254 = smul.addr %s253, 8
        %s255 = scalar_lea.vmem %s0, %s254
        %p256 = pneg %p42
        %p257 = pneg %p39
        %s258 = smul.u32 8, %s21
        %p259 = scmp.lt.s32.totalorder %s258, 15
        %s260 = scalar_select %p259, %s258, 15
        %s261 = smul.addr %s260, 2
        %s262 = smul.addr %s261, 8
        %s263 = scalar_lea.vmem %s1, %s262
        %p264 = pneg %p68
        %p265 = pneg %p65
        %s266 = smul.u32 8, %s21
        %p267 = scmp.lt.s32.totalorder %s266, 15
        %s268 = scalar_select %p267, %s266, 15
        %s269 = smul.addr %s268, 3
        %s270 = smul.addr %s269, 8
        %s271 = scalar_lea.vmem %s2, %s270
        %p272 = pneg %p94
        %p273 = pneg %p91
        %p274 = pneg %p115
        %p275 = pneg %p112
        %p276 = pneg %p136
        %p277 = pneg %p133
        %p278 = pneg %p162
        %p279 = pneg %p159
        %p280 = scmp.lt.s32.totalorder %s21, 1
        %s281 = scalar_select %p280, %s21, 1
        %s282 = smul.addr %s281, 8
        %s283 = scalar_lea.vmem %s5, %s282
        %p284 = pneg %p188
        %p285 = pneg %p185
        %s286 = sand.u32 %s175, 1
        %s287 = scalar_lea.sflag [#allocation3], %s286
        %s288 = sand.u32 %s175, 1
        %s289 = smul.addr %s288, 16
        %s290 = scalar_lea.vmem [#allocation2], %s289
        %s291 = smul.u32 8, %s21
        %p292 = scmp.lt.s32.totalorder %s291, 15
        %s293 = scalar_select %p292, %s291, 15
        %s294 = smul.addr %s293, 2
        %s295 = smul.addr %s294, 8
        %s296 = scalar_lea.vmem %s0, %s295
        %s297 = smul.u32 8, %s21
        %s298 = smul.u32 8, %s21
        %p299 = scmp.lt.s32.totalorder %s298, 15
        %s300 = scalar_select %p299, %s298, 15
        %s301 = smul.addr %s300, 2
        %s302 = smul.addr %s301, 8
        %s303 = scalar_lea.vmem %s1, %s302
        %s304 = smul.u32 8, %s21
        %s305 = smul.u32 8, %s21
        %p306 = scmp.lt.s32.totalorder %s305, 15
        %s307 = scalar_select %p306, %s305, 15
        %s308 = smul.addr %s307, 3
        %s309 = smul.addr %s308, 8
        %s310 = scalar_lea.vmem %s2, %s309
        %s311 = smul.u32 8, %s21
        %p312 = scmp.lt.s32.totalorder %s21, 1
        %s313 = scalar_select %p312, %s21, 1
        %s314 = smul.addr %s313, 8
        %s315 = scalar_lea.vmem %s5, %s314
        %s316 = smul.u32 2, %s21
        %v317 = vld [vmem:[%s296] sm:$0xff]
        %v318 = vld [vmem:[%s296 + $0x8] sm:$0xff]
        %v319 = vld [vmem:[%s296 + $0x10] sm:$0xff]
        %v320 = vld [vmem:[%s296 + $0x18] sm:$0xff]
        %v321 = vld [vmem:[%s296 + $0x20] sm:$0xff]
        %v322 = vld [vmem:[%s296 + $0x28] sm:$0xff]
        %v323 = vld [vmem:[%s296 + $0x30] sm:$0xff]
        %v324 = vld [vmem:[%s296 + $0x38] sm:$0xff]
        %v325 = vld [vmem:[%s296 + $0x40] sm:$0xff]
        %v326 = vld [vmem:[%s296 + $0x48] sm:$0xff]
        %v327 = vld [vmem:[%s296 + $0x50] sm:$0xff]
        %v328 = vld [vmem:[%s296 + $0x58] sm:$0xff]
        %v329 = vld [vmem:[%s296 + $0x60] sm:$0xff]
        %v330 = vld [vmem:[%s296 + $0x68] sm:$0xff]
        %v331 = vld [vmem:[%s296 + $0x70] sm:$0xff]
        %v332 = vld [vmem:[%s296 + $0x78] sm:$0xff]
        %v333 = vld [vmem:[%s303] sm:$0xff]
        %v334 = vld [vmem:[%s303 + $0x8] sm:$0xff]
        %v335 = vld [vmem:[%s303 + $0x10] sm:$0xff]
        %v336 = vld [vmem:[%s303 + $0x18] sm:$0xff]
        %v337 = vld [vmem:[%s303 + $0x20] sm:$0xff]
        %v338 = vld [vmem:[%s303 + $0x28] sm:$0xff]
        %v339 = vld [vmem:[%s303 + $0x30] sm:$0xff]
        %v340 = vld [vmem:[%s303 + $0x38] sm:$0xff]
        %v341 = vld [vmem:[%s303 + $0x40] sm:$0xff]
        %v342 = vld [vmem:[%s303 + $0x48] sm:$0xff]
        %v343 = vld [vmem:[%s303 + $0x50] sm:$0xff]
        %v344 = vld [vmem:[%s303 + $0x58] sm:$0xff]
        %v345 = vld [vmem:[%s303 + $0x60] sm:$0xff]
        %v346 = vld [vmem:[%s303 + $0x68] sm:$0xff]
        %v347 = vld [vmem:[%s303 + $0x70] sm:$0xff]
        %v348 = vld [vmem:[%s303 + $0x78] sm:$0xff]
        %v349 = vld [vmem:[%s310] sm:$0xff]
        %v350 = vld [vmem:[%s310 + $0x8] sm:$0xff]
        %v351 = vld [vmem:[%s310 + $0x10] sm:$0xff]
        %v352 = vld [vmem:[%s310 + $0x18] sm:$0xff]
        %v353 = vld [vmem:[%s310 + $0x20] sm:$0xff]
        %v354 = vld [vmem:[%s310 + $0x28] sm:$0xff]
        %v355 = vld [vmem:[%s310 + $0x30] sm:$0xff]
        %v356 = vld [vmem:[%s310 + $0x38] sm:$0xff]
        %v357 = vld [vmem:[%s310 + $0x40] sm:$0xff]
        %v358 = vld [vmem:[%s310 + $0x48] sm:$0xff]
        %v359 = vld [vmem:[%s310 + $0x50] sm:$0xff]
        %v360 = vld [vmem:[%s310 + $0x58] sm:$0xff]
        %v361 = vld [vmem:[%s310 + $0x60] sm:$0xff]
        %v362 = vld [vmem:[%s310 + $0x68] sm:$0xff]
        %v363 = vld [vmem:[%s310 + $0x70] sm:$0xff]
        %v364 = vld [vmem:[%s310 + $0x78] sm:$0xff]
        %v365 = vld [vmem:[%s310 + $0x80] sm:$0xff]
        %v366 = vld [vmem:[%s310 + $0x88] sm:$0xff]
        %v367 = vld [vmem:[%s310 + $0x90] sm:$0xff]
        %v368 = vld [vmem:[%s310 + $0x98] sm:$0xff]
        %v369 = vld [vmem:[%s310 + $0xa0] sm:$0xff]
        %v370 = vld [vmem:[%s310 + $0xa8] sm:$0xff]
        %v371 = vld [vmem:[%s310 + $0xb0] sm:$0xff]
        %v372 = vld [vmem:[%s310 + $0xb8] sm:$0xff]
        %v373 = vld [vmem:[%s3] sm:$0xff]
        %v374 = vld [vmem:[%s3 + $0x8] sm:$0xff]
        %v375 = vld [vmem:[%s3 + $0x10] sm:$0xff]
        %v376 = vld [vmem:[%s3 + $0x18] sm:$0xff]
        %v377 = vld [vmem:[%s3 + $0x20] sm:$0xff]
        %v378 = vld [vmem:[%s3 + $0x28] sm:$0xff]
        %v379 = vld [vmem:[%s3 + $0x30] sm:$0xff]
        %v380 = vld [vmem:[%s3 + $0x38] sm:$0xff]
        %v381 = vld [vmem:[%s3 + $0x40] sm:$0xff]
        %v382 = vld [vmem:[%s3 + $0x48] sm:$0xff]
        %v383 = vld [vmem:[%s3 + $0x50] sm:$0xff]
        %v384 = vld [vmem:[%s3 + $0x58] sm:$0xff]
        %v385 = vld [vmem:[%s3 + $0x60] sm:$0xff]
        %v386 = vld [vmem:[%s3 + $0x68] sm:$0xff]
        %v387 = vld [vmem:[%s3 + $0x70] sm:$0xff]
        %v388 = vld [vmem:[%s3 + $0x78] sm:$0xff]
        %v389 = vld [vmem:[%s3 + $0x80] sm:$0xff]
        %v390 = vld [vmem:[%s3 + $0x88] sm:$0xff]
        %v391 = vld [vmem:[%s3 + $0x90] sm:$0xff]
        %v392 = vld [vmem:[%s3 + $0x98] sm:$0xff]
        %v393 = vld [vmem:[%s3 + $0xa0] sm:$0xff]
        %v394 = vld [vmem:[%s3 + $0xa8] sm:$0xff]
        %v395 = vld [vmem:[%s3 + $0xb0] sm:$0xff]
        %v396 = vld [vmem:[%s3 + $0xb8] sm:$0xff]
        %v397 = vld [vmem:[%s3 + $0xc0] sm:$0xff]
        %v398 = vld [vmem:[%s3 + $0xc8] sm:$0xff]
        %v399 = vld [vmem:[%s3 + $0xd0] sm:$0xff]
        %v400 = vld [vmem:[%s3 + $0xd8] sm:$0xff]
        %v401 = vld [vmem:[%s3 + $0xe0] sm:$0xff]
        %v402 = vld [vmem:[%s3 + $0xe8] sm:$0xff]
        %v403 = vld [vmem:[%s3 + $0xf0] sm:$0xff]
        %v404 = vld [vmem:[%s3 + $0xf8] sm:$0xff]
        %v405 = vld [vmem:[%s4] sm:$0xff]
        %v406 = vld [vmem:[%s4 + $0x8] sm:$0xff]
        %v407 = vld [vmem:[%s4 + $0x10] sm:$0xff]
        %v408 = vld [vmem:[%s4 + $0x18] sm:$0xff]
        %v409 = vld [vmem:[%s4 + $0x20] sm:$0xff]
        %v410 = vld [vmem:[%s4 + $0x28] sm:$0xff]
        %v411 = vld [vmem:[%s4 + $0x30] sm:$0xff]
        %v412 = vld [vmem:[%s4 + $0x38] sm:$0xff]
        %v413 = vld [vmem:[%s4 + $0x40] sm:$0xff]
        %v414 = vld [vmem:[%s4 + $0x48] sm:$0xff]
        %v415 = vld [vmem:[%s4 + $0x50] sm:$0xff]
        %v416 = vld [vmem:[%s4 + $0x58] sm:$0xff]
        %v417 = vld [vmem:[%s4 + $0x60] sm:$0xff]
        %v418 = vld [vmem:[%s4 + $0x68] sm:$0xff]
        %v419 = vld [vmem:[%s4 + $0x70] sm:$0xff]
        %v420 = vld [vmem:[%s4 + $0x78] sm:$0xff]
        %v421 = vld [vmem:[%s4 + $0x80] sm:$0xff]
        %v422 = vld [vmem:[%s4 + $0x88] sm:$0xff]
        %v423 = vld [vmem:[%s4 + $0x90] sm:$0xff]
        %v424 = vld [vmem:[%s4 + $0x98] sm:$0xff]
        %v425 = vld [vmem:[%s4 + $0xa0] sm:$0xff]
        %v426 = vld [vmem:[%s4 + $0xa8] sm:$0xff]
        %v427 = vld [vmem:[%s4 + $0xb0] sm:$0xff]
        %v428 = vld [vmem:[%s4 + $0xb8] sm:$0xff]
        %v429 = vld [vmem:[%s4 + $0xc0] sm:$0xff]
        %v430 = vld [vmem:[%s4 + $0xc8] sm:$0xff]
        %v431 = vld [vmem:[%s4 + $0xd0] sm:$0xff]
        %v432 = vld [vmem:[%s4 + $0xd8] sm:$0xff]
        %v433 = vld [vmem:[%s4 + $0xe0] sm:$0xff]
        %v434 = vld [vmem:[%s4 + $0xe8] sm:$0xff]
        %v435 = vld [vmem:[%s4 + $0xf0] sm:$0xff]
        %v436 = vld [vmem:[%s4 + $0xf8] sm:$0xff]
        %v437 = vld [vmem:[%s4 + $0x100] sm:$0xff]
        %v438 = vld [vmem:[%s4 + $0x108] sm:$0xff]
        %v439 = vld [vmem:[%s4 + $0x110] sm:$0xff]
        %v440 = vld [vmem:[%s4 + $0x118] sm:$0xff]
        %v441 = vld [vmem:[%s4 + $0x120] sm:$0xff]
        %v442 = vld [vmem:[%s4 + $0x128] sm:$0xff]
        %v443 = vld [vmem:[%s4 + $0x130] sm:$0xff]
        %v444 = vld [vmem:[%s4 + $0x138] sm:$0xff]
        %v445 = vld [vmem:[%s4 + $0x140] sm:$0xff]
        %v446 = vld [vmem:[%s4 + $0x148] sm:$0xff]
        %v447 = vld [vmem:[%s4 + $0x150] sm:$0xff]
        %v448 = vld [vmem:[%s4 + $0x158] sm:$0xff]
        %v449 = vld [vmem:[%s4 + $0x160] sm:$0xff]
        %v450 = vld [vmem:[%s4 + $0x168] sm:$0xff]
        %v451 = vld [vmem:[%s4 + $0x170] sm:$0xff]
        %v452 = vld [vmem:[%s4 + $0x178] sm:$0xff]
        %v453 = vsub.f32 %v317, %v333
        %v454 = vsub.f32 %v318, %v334
        %v455 = vsub.f32 %v319, %v335
        %v456 = vsub.f32 %v320, %v336
        %v457 = vsub.f32 %v321, %v337
        %v458 = vsub.f32 %v322, %v338
        %v459 = vsub.f32 %v323, %v339
        %v460 = vsub.f32 %v324, %v340
        %v461 = vsub.f32 %v325, %v341
        %v462 = vsub.f32 %v326, %v342
        %v463 = vsub.f32 %v327, %v343
        %v464 = vsub.f32 %v328, %v344
        %v465 = vsub.f32 %v329, %v345
        %v466 = vsub.f32 %v330, %v346
        %v467 = vsub.f32 %v331, %v347
        %v468 = vsub.f32 %v332, %v348
        %v469 = vmul.f32 %v317, %v317
        %v470 = vmul.f32 %v318, %v318
        %v471 = vmul.f32 %v319, %v319
        %v472 = vmul.f32 %v320, %v320
        %v473 = vmul.f32 %v321, %v321
        %v474 = vmul.f32 %v322, %v322
        %v475 = vmul.f32 %v323, %v323
        %v476 = vmul.f32 %v324, %v324
        %v477 = vmul.f32 %v325, %v325
        %v478 = vmul.f32 %v326, %v326
        %v479 = vmul.f32 %v327, %v327
        %v480 = vmul.f32 %v328, %v328
        %v481 = vmul.f32 %v329, %v329
        %v482 = vmul.f32 %v330, %v330
        %v483 = vmul.f32 %v331, %v331
        %v484 = vmul.f32 %v332, %v332
        %485 = vmatprep.subr.mxu0 0.0
        %486 = vmatpush1.msra.mxu0 %v373
        %487 = vmatprep.subr.mxu0 0.0
        %488 = vmatpush1.msra.mxu0 %v374
        %489 = vmatprep.subr.mxu0 0.0
        %490 = vmatpush1.msra.mxu0 %v375
        %491 = vmatprep.subr.mxu0 0.0
        %492 = vmatpush1.msra.mxu0 %v376
        %493 = vmatprep.subr.mxu0 0.0
        %494 = vmatpush1.msra.mxu0 %v377
        %495 = vmatprep.subr.mxu0 0.0
        %496 = vmatpush1.msra.mxu0 %v378
        %497 = vmatprep.subr.mxu0 0.0
        %498 = vmatpush1.msra.mxu0 %v379
        %499 = vmatprep.subr.mxu0 0.0
        %500 = vmatpush1.msra.mxu0 %v380
        %501 = vmatprep.subr.mxu0 0.0
        %502 = vmatpush1.msra.mxu0 %v381
        %503 = vmatprep.subr.mxu0 0.0
        %504 = vmatpush1.msra.mxu0 %v382
        %505 = vmatprep.subr.mxu0 0.0
        %506 = vmatpush1.msra.mxu0 %v383
        %507 = vmatprep.subr.mxu0 0.0
        %508 = vmatpush1.msra.mxu0 %v384
        %509 = vmatprep.subr.mxu0 0.0
        %510 = vmatpush1.msra.mxu0 %v385
        %511 = vmatprep.subr.mxu0 0.0
        %512 = vmatpush1.msra.mxu0 %v386
        %513 = vmatprep.subr.mxu0 0.0
        %514 = vmatpush1.msra.mxu0 %v387
        %515 = vmatprep.subr.mxu0 0.0
        %516 = vmatpush1.msra.mxu0 %v388
        %517 = vmatprep.subr.mxu0 0.0
        %518 = vmatpush1.msra.mxu0 %v389
        %519 = vmatprep.subr.mxu0 0.0
        %520 = vmatpush1.msra.mxu0 %v390
        %521 = vmatprep.subr.mxu0 0.0
        %522 = vmatpush1.msra.mxu0 %v391
        %523 = vmatprep.subr.mxu0 0.0
        %524 = vmatpush1.msra.mxu0 %v392
        %525 = vmatprep.subr.mxu0 0.0
        %526 = vmatpush1.msra.mxu0 %v393
        %527 = vmatprep.subr.mxu0 0.0
        %528 = vmatpush1.msra.mxu0 %v394
        %529 = vmatprep.subr.mxu0 0.0
        %530 = vmatpush1.msra.mxu0 %v395
        %531 = vmatprep.subr.mxu0 0.0
        %532 = vmatpush1.msra.mxu0 %v396
        %533 = vmatprep.subr.mxu0 0.0
        %534 = vmatpush1.msra.mxu0 %v397
        %535 = vmatprep.subr.mxu0 0.0
        %536 = vmatpush1.msra.mxu0 %v398
        %537 = vmatprep.subr.mxu0 0.0
        %538 = vmatpush1.msra.mxu0 %v399
        %539 = vmatprep.subr.mxu0 0.0
        %540 = vmatpush1.msra.mxu0 %v400
        %541 = vmatprep.subr.mxu0 0.0
        %542 = vmatpush1.msra.mxu0 %v401
        %543 = vmatprep.subr.mxu0 0.0
        %544 = vmatpush1.msra.mxu0 %v402
        %545 = vmatprep.subr.mxu0 0.0
        %546 = vmatpush1.msra.mxu0 %v403
        %547 = vmatprep.subr.mxu0 0.0
        %548 = vmatpush1.msra.mxu0 %v404
        %549 = vmatprep.mubr.f32.mxu0 %v470
        %550 = vmatmul.mubr.f32.gmra.mrb[0].mxu0 %v469
        %v551 = vpop.f32.mrb[0].mxu0
        %v552 = vadd.f32 0.0, %v551
        %v553 = vpop.f32.mrb[0].mxu0
        %554 = vmatprep.mubr.f32.mxu0 %v472
        %555 = vmatmul.mubr.f32.gmra.mrb[0].mxu0 %v471
        %v556 = vpop.f32.mrb[0].mxu0
        %v557 = vadd.f32 0.0, %v556
        %v558 = vpop.f32.mrb[0].mxu0
        %559 = vmatprep.mubr.f32.mxu0 %v474
        %560 = vmatmul.mubr.f32.gmra.mrb[0].mxu0 %v473
        %v561 = vpop.f32.mrb[0].mxu0
        %v562 = vadd.f32 0.0, %v561
        %v563 = vpop.f32.mrb[0].mxu0
        %564 = vmatprep.mubr.f32.mxu0 %v476
        %565 = vmatmul.mubr.f32.gmra.mrb[0].mxu0 %v475
        %v566 = vpop.f32.mrb[0].mxu0
        %v567 = vadd.f32 0.0, %v566
        %v568 = vpop.f32.mrb[0].mxu0
        %569 = vmatprep.mubr.f32.mxu0 %v478
        %570 = vmatmul.mubr.f32.gmra.mrb[0].mxu0 %v477
        %v571 = vpop.f32.mrb[0].mxu0
        %v572 = vadd.f32 0.0, %v571
        %v573 = vpop.f32.mrb[0].mxu0
        %574 = vmatprep.mubr.f32.mxu0 %v480
        %575 = vmatmul.mubr.f32.gmra.mrb[0].mxu0 %v479
        %v576 = vpop.f32.mrb[0].mxu0
        %v577 = vadd.f32 0.0, %v576
        %v578 = vpop.f32.mrb[0].mxu0
        %579 = vmatprep.mubr.f32.mxu0 %v482
        %580 = vmatmul.mubr.f32.gmra.mrb[0].mxu0 %v481
        %v581 = vpop.f32.mrb[0].mxu0
        %v582 = vadd.f32 0.0, %v581
        %v583 = vpop.f32.mrb[0].mxu0
        %584 = vmatprep.mubr.f32.mxu0 %v484
        %585 = vmatmul.mubr.f32.gmra.mrb[0].mxu0 %v483
        %v586 = vpop.f32.mrb[0].mxu0
        %v587 = vadd.f32 0.0, %v586
        %v588 = vpop.f32.mrb[0].mxu0
        %589 = vdwg.mxu0
        %v590 = vmul.f32 %v453, %v453
        %v591 = vmul.f32 %v454, %v454
        %v592 = vmul.f32 %v455, %v455
        %v593 = vmul.f32 %v456, %v456
        %v594 = vmul.f32 %v457, %v457
        %v595 = vmul.f32 %v458, %v458
        %v596 = vmul.f32 %v459, %v459
        %v597 = vmul.f32 %v460, %v460
        %v598 = vmul.f32 %v461, %v461
        %v599 = vmul.f32 %v462, %v462
        %v600 = vmul.f32 %v463, %v463
        %v601 = vmul.f32 %v464, %v464
        %v602 = vmul.f32 %v465, %v465
        %v603 = vmul.f32 %v466, %v466
        %v604 = vmul.f32 %v467, %v467
        %v605 = vmul.f32 %v468, %v468
        %606 = vmatprep.subr.mxu0 0.0
        %607 = vmatpush1.msra.mxu0 %v373
        %608 = vmatprep.subr.mxu0 0.0
        %609 = vmatpush1.msra.mxu0 %v374
        %610 = vmatprep.subr.mxu0 0.0
        %611 = vmatpush1.msra.mxu0 %v375
        %612 = vmatprep.subr.mxu0 0.0
        %613 = vmatpush1.msra.mxu0 %v376
        %614 = vmatprep.subr.mxu0 0.0
        %615 = vmatpush1.msra.mxu0 %v377
        %616 = vmatprep.subr.mxu0 0.0
        %617 = vmatpush1.msra.mxu0 %v378
        %618 = vmatprep.subr.mxu0 0.0
        %619 = vmatpush1.msra.mxu0 %v379
        %620 = vmatprep.subr.mxu0 0.0
        %621 = vmatpush1.msra.mxu0 %v380
        %622 = vmatprep.subr.mxu0 0.0
        %623 = vmatpush1.msra.mxu0 %v381
        %624 = vmatprep.subr.mxu0 0.0
        %625 = vmatpush1.msra.mxu0 %v382
        %626 = vmatprep.subr.mxu0 0.0
        %627 = vmatpush1.msra.mxu0 %v383
        %628 = vmatprep.subr.mxu0 0.0
        %629 = vmatpush1.msra.mxu0 %v384
        %630 = vmatprep.subr.mxu0 0.0
        %631 = vmatpush1.msra.mxu0 %v385
        %632 = vmatprep.subr.mxu0 0.0
        %633 = vmatpush1.msra.mxu0 %v386
        %634 = vmatprep.subr.mxu0 0.0
        %635 = vmatpush1.msra.mxu0 %v387
        %636 = vmatprep.subr.mxu0 0.0
        %637 = vmatpush1.msra.mxu0 %v388
        %638 = vmatprep.subr.mxu0 0.0
        %639 = vmatpush1.msra.mxu0 %v389
        %640 = vmatprep.subr.mxu0 0.0
        %641 = vmatpush1.msra.mxu0 %v390
        %642 = vmatprep.subr.mxu0 0.0
        %643 = vmatpush1.msra.mxu0 %v391
        %644 = vmatprep.subr.mxu0 0.0
        %645 = vmatpush1.msra.mxu0 %v392
        %646 = vmatprep.subr.mxu0 0.0
        %647 = vmatpush1.msra.mxu0 %v393
        %648 = vmatprep.subr.mxu0 0.0
        %649 = vmatpush1.msra.mxu0 %v394
        %650 = vmatprep.subr.mxu0 0.0
        %651 = vmatpush1.msra.mxu0 %v395
        %652 = vmatprep.subr.mxu0 0.0
        %653 = vmatpush1.msra.mxu0 %v396
        %654 = vmatprep.subr.mxu0 0.0
        %655 = vmatpush1.msra.mxu0 %v397
        %656 = vmatprep.subr.mxu0 0.0
        %657 = vmatpush1.msra.mxu0 %v398
        %658 = vmatprep.subr.mxu0 0.0
        %659 = vmatpush1.msra.mxu0 %v399
        %660 = vmatprep.subr.mxu0 0.0
        %661 = vmatpush1.msra.mxu0 %v400
        %662 = vmatprep.subr.mxu0 0.0
        %663 = vmatpush1.msra.mxu0 %v401
        %664 = vmatprep.subr.mxu0 0.0
        %665 = vmatpush1.msra.mxu0 %v402
        %666 = vmatprep.subr.mxu0 0.0
        %667 = vmatpush1.msra.mxu0 %v403
        %668 = vmatprep.subr.mxu0 0.0
        %669 = vmatpush1.msra.mxu0 %v404
        %670 = vmatprep.mubr.f32.mxu0 %v591
        %671 = vmatmul.mubr.f32.gmra.mrb[0].mxu0 %v590
        %v672 = vpop.f32.mrb[0].mxu0
        %v673 = vadd.f32 0.0, %v672
        %v674 = vpop.f32.mrb[0].mxu0
        %675 = vmatprep.mubr.f32.mxu0 %v593
        %676 = vmatmul.mubr.f32.gmra.mrb[0].mxu0 %v592
        %v677 = vpop.f32.mrb[0].mxu0
        %v678 = vadd.f32 0.0, %v677
        %v679 = vpop.f32.mrb[0].mxu0
        %680 = vmatprep.mubr.f32.mxu0 %v595
        %681 = vmatmul.mubr.f32.gmra.mrb[0].mxu0 %v594
        %v682 = vpop.f32.mrb[0].mxu0
        %v683 = vadd.f32 0.0, %v682
        %v684 = vpop.f32.mrb[0].mxu0
        %685 = vmatprep.mubr.f32.mxu0 %v597
        %686 = vmatmul.mubr.f32.gmra.mrb[0].mxu0 %v596
        %v687 = vpop.f32.mrb[0].mxu0
        %v688 = vadd.f32 0.0, %v687
        %v689 = vpop.f32.mrb[0].mxu0
        %690 = vmatprep.mubr.f32.mxu0 %v599
        %691 = vmatmul.mubr.f32.gmra.mrb[0].mxu0 %v598
        %v692 = vpop.f32.mrb[0].mxu0
        %v693 = vadd.f32 0.0, %v692
        %v694 = vpop.f32.mrb[0].mxu0
        %695 = vmatprep.mubr.f32.mxu0 %v601
        %696 = vmatmul.mubr.f32.gmra.mrb[0].mxu0 %v600
        %v697 = vpop.f32.mrb[0].mxu0
        %v698 = vadd.f32 0.0, %v697
        %v699 = vpop.f32.mrb[0].mxu0
        %700 = vmatprep.mubr.f32.mxu0 %v603
        %701 = vmatmul.mubr.f32.gmra.mrb[0].mxu0 %v602
        %v702 = vpop.f32.mrb[0].mxu0
        %v703 = vadd.f32 0.0, %v702
        %v704 = vpop.f32.mrb[0].mxu0
        %705 = vmatprep.mubr.f32.mxu0 %v605
        %706 = vmatmul.mubr.f32.gmra.mrb[0].mxu0 %v604
        %v707 = vpop.f32.mrb[0].mxu0
        %v708 = vadd.f32 0.0, %v707
        %v709 = vpop.f32.mrb[0].mxu0
        %710 = vdwg.mxu0
        %v711 = vmul.f32 %v349, %v349
        %v712 = vmul.f32 %v350, %v350
        %v713 = vmul.f32 %v351, %v351
        %v714 = vmul.f32 %v352, %v352
        %v715 = vmul.f32 %v353, %v353
        %v716 = vmul.f32 %v354, %v354
        %v717 = vmul.f32 %v355, %v355
        %v718 = vmul.f32 %v356, %v356
        %v719 = vmul.f32 %v357, %v357
        %v720 = vmul.f32 %v358, %v358
        %v721 = vmul.f32 %v359, %v359
        %v722 = vmul.f32 %v360, %v360
        %v723 = vmul.f32 %v361, %v361
        %v724 = vmul.f32 %v362, %v362
        %v725 = vmul.f32 %v363, %v363
        %v726 = vmul.f32 %v364, %v364
        %v727 = vmul.f32 %v365, %v365
        %v728 = vmul.f32 %v366, %v366
        %v729 = vmul.f32 %v367, %v367
        %v730 = vmul.f32 %v368, %v368
        %v731 = vmul.f32 %v369, %v369
        %v732 = vmul.f32 %v370, %v370
        %v733 = vmul.f32 %v371, %v371
        %v734 = vmul.f32 %v372, %v372
        %735 = vmatprep.subr.mxu0 0.0
        %736 = vmatpush1.msra.mxu0 %v405
        %737 = vmatprep.subr.mxu0 0.0
        %738 = vmatpush1.msra.mxu0 %v406
        %739 = vmatprep.subr.mxu0 0.0
        %740 = vmatpush1.msra.mxu0 %v407
        %741 = vmatprep.subr.mxu0 0.0
        %742 = vmatpush1.msra.mxu0 %v408
        %743 = vmatprep.subr.mxu0 0.0
        %744 = vmatpush1.msra.mxu0 %v409
        %745 = vmatprep.subr.mxu0 0.0
        %746 = vmatpush1.msra.mxu0 %v410
        %747 = vmatprep.subr.mxu0 0.0
        %748 = vmatpush1.msra.mxu0 %v411
        %749 = vmatprep.subr.mxu0 0.0
        %750 = vmatpush1.msra.mxu0 %v412
        %751 = vmatprep.subr.mxu0 0.0
        %752 = vmatpush1.msra.mxu0 %v413
        %753 = vmatprep.subr.mxu0 0.0
        %754 = vmatpush1.msra.mxu0 %v414
        %755 = vmatprep.subr.mxu0 0.0
        %756 = vmatpush1.msra.mxu0 %v415
        %757 = vmatprep.subr.mxu0 0.0
        %758 = vmatpush1.msra.mxu0 %v416
        %759 = vmatprep.subr.mxu0 0.0
        %760 = vmatpush1.msra.mxu0 %v417
        %761 = vmatprep.subr.mxu0 0.0
        %762 = vmatpush1.msra.mxu0 %v418
        %763 = vmatprep.subr.mxu0 0.0
        %764 = vmatpush1.msra.mxu0 %v419
        %765 = vmatprep.subr.mxu0 0.0
        %766 = vmatpush1.msra.mxu0 %v420
        %767 = vmatprep.subr.mxu0 0.0
        %768 = vmatpush1.msra.mxu0 %v421
        %769 = vmatprep.subr.mxu0 0.0
        %770 = vmatpush1.msra.mxu0 %v422
        %771 = vmatprep.subr.mxu0 0.0
        %772 = vmatpush1.msra.mxu0 %v423
        %773 = vmatprep.subr.mxu0 0.0
        %774 = vmatpush1.msra.mxu0 %v424
        %775 = vmatprep.subr.mxu0 0.0
        %776 = vmatpush1.msra.mxu0 %v425
        %777 = vmatprep.subr.mxu0 0.0
        %778 = vmatpush1.msra.mxu0 %v426
        %779 = vmatprep.subr.mxu0 0.0
        %780 = vmatpush1.msra.mxu0 %v427
        %781 = vmatprep.subr.mxu0 0.0
        %782 = vmatpush1.msra.mxu0 %v428
        %783 = vmatprep.subr.mxu0 0.0
        %784 = vmatpush1.msra.mxu0 %v429
        %785 = vmatprep.subr.mxu0 0.0
        %786 = vmatpush1.msra.mxu0 %v430
        %787 = vmatprep.subr.mxu0 0.0
        %788 = vmatpush1.msra.mxu0 %v431
        %789 = vmatprep.subr.mxu0 0.0
        %790 = vmatpush1.msra.mxu0 %v432
        %791 = vmatprep.subr.mxu0 0.0
        %792 = vmatpush1.msra.mxu0 %v433
        %793 = vmatprep.subr.mxu0 0.0
        %794 = vmatpush1.msra.mxu0 %v434
        %795 = vmatprep.subr.mxu0 0.0
        %796 = vmatpush1.msra.mxu0 %v435
        %797 = vmatprep.subr.mxu0 0.0
        %798 = vmatpush1.msra.mxu0 %v436
        %799 = vmatprep.mubr.f32.mxu0 %v712
        %800 = vmatmul.mubr.f32.gmra.mrb[0].mxu0 %v711
        %v801 = vpop.f32.mrb[0].mxu0
        %v802 = vadd.f32 0.0, %v801
        %v803 = vpop.f32.mrb[0].mxu0
        %804 = vmatprep.mubr.f32.mxu0 %v715
        %805 = vmatmul.mubr.f32.gmra.mrb[0].mxu0 %v714
        %v806 = vpop.f32.mrb[0].mxu0
        %v807 = vadd.f32 0.0, %v806
        %v808 = vpop.f32.mrb[0].mxu0
        %809 = vmatprep.mubr.f32.mxu0 %v718
        %810 = vmatmul.mubr.f32.gmra.mrb[0].mxu0 %v717
        %v811 = vpop.f32.mrb[0].mxu0
        %v812 = vadd.f32 0.0, %v811
        %v813 = vpop.f32.mrb[0].mxu0
        %814 = vmatprep.mubr.f32.mxu0 %v721
        %815 = vmatmul.mubr.f32.gmra.mrb[0].mxu0 %v720
        %v816 = vpop.f32.mrb[0].mxu0
        %v817 = vadd.f32 0.0, %v816
        %v818 = vpop.f32.mrb[0].mxu0
        %819 = vmatprep.mubr.f32.mxu0 %v724
        %820 = vmatmul.mubr.f32.gmra.mrb[0].mxu0 %v723
        %v821 = vpop.f32.mrb[0].mxu0
        %v822 = vadd.f32 0.0, %v821
        %v823 = vpop.f32.mrb[0].mxu0
        %824 = vmatprep.mubr.f32.mxu0 %v727
        %825 = vmatmul.mubr.f32.gmra.mrb[0].mxu0 %v726
        %v826 = vpop.f32.mrb[0].mxu0
        %v827 = vadd.f32 0.0, %v826
        %v828 = vpop.f32.mrb[0].mxu0
        %829 = vmatprep.mubr.f32.mxu0 %v730
        %830 = vmatmul.mubr.f32.gmra.mrb[0].mxu0 %v729
        %v831 = vpop.f32.mrb[0].mxu0
        %v832 = vadd.f32 0.0, %v831
        %v833 = vpop.f32.mrb[0].mxu0
        %834 = vmatprep.mubr.f32.mxu0 %v733
        %835 = vmatmul.mubr.f32.gmra.mrb[0].mxu0 %v732
        %v836 = vpop.f32.mrb[0].mxu0
        %v837 = vadd.f32 0.0, %v836
        %v838 = vpop.f32.mrb[0].mxu0
        %839 = vdwg.mxu0
        %840 = vmatprep.subr.mxu0 0.0
        %841 = vmatpush1.msra.mxu0 %v437
        %842 = vmatprep.subr.mxu0 0.0
        %843 = vmatpush1.msra.mxu0 %v438
        %844 = vmatprep.subr.mxu0 0.0
        %845 = vmatpush1.msra.mxu0 %v439
        %846 = vmatprep.subr.mxu0 0.0
        %847 = vmatpush1.msra.mxu0 %v440
        %848 = vmatprep.subr.mxu0 0.0
        %849 = vmatpush1.msra.mxu0 %v441
        %850 = vmatprep.subr.mxu0 0.0
        %851 = vmatpush1.msra.mxu0 %v442
        %852 = vmatprep.subr.mxu0 0.0
        %853 = vmatpush1.msra.mxu0 %v443
        %854 = vmatprep.subr.mxu0 0.0
        %855 = vmatpush1.msra.mxu0 %v444
        %856 = vmatprep.subr.mxu0 0.0
        %857 = vmatpush1.msra.mxu0 %v445
        %858 = vmatprep.subr.mxu0 0.0
        %859 = vmatpush1.msra.mxu0 %v446
        %860 = vmatprep.subr.mxu0 0.0
        %861 = vmatpush1.msra.mxu0 %v447
        %862 = vmatprep.subr.mxu0 0.0
        %863 = vmatpush1.msra.mxu0 %v448
        %864 = vmatprep.subr.mxu0 0.0
        %865 = vmatpush1.msra.mxu0 %v449
        %866 = vmatprep.subr.mxu0 0.0
        %867 = vmatpush1.msra.mxu0 %v450
        %868 = vmatprep.subr.mxu0 0.0
        %869 = vmatpush1.msra.mxu0 %v451
        %870 = vmatprep.subr.mxu0 0.0
        %871 = vmatpush1.msra.mxu0 %v452
        %872 = vmatprep.subr.mxu0 0.0
        %873 = vmatpush1.msra.mxu0 0.0
        %874 = vmatprep.subr.mxu0 0.0
        %875 = vmatpush1.msra.mxu0 0.0
        %876 = vmatprep.subr.mxu0 0.0
        %877 = vmatpush1.msra.mxu0 0.0
        %878 = vmatprep.subr.mxu0 0.0
        %879 = vmatpush1.msra.mxu0 0.0
        %880 = vmatprep.subr.mxu0 0.0
        %881 = vmatpush1.msra.mxu0 0.0
        %882 = vmatprep.subr.mxu0 0.0
        %883 = vmatpush1.msra.mxu0 0.0
        %884 = vmatprep.subr.mxu0 0.0
        %885 = vmatpush1.msra.mxu0 0.0
        %886 = vmatprep.subr.mxu0 0.0
        %887 = vmatpush1.msra.mxu0 0.0
        %888 = vmatprep.subr.mxu0 0.0
        %889 = vmatpush1.msra.mxu0 0.0
        %890 = vmatprep.subr.mxu0 0.0
        %891 = vmatpush1.msra.mxu0 0.0
        %892 = vmatprep.subr.mxu0 0.0
        %893 = vmatpush1.msra.mxu0 0.0
        %894 = vmatprep.subr.mxu0 0.0
        %895 = vmatpush1.msra.mxu0 0.0
        %896 = vmatprep.subr.mxu0 0.0
        %897 = vmatpush1.msra.mxu0 0.0
        %898 = vmatprep.subr.mxu0 0.0
        %899 = vmatpush1.msra.mxu0 0.0
        %900 = vmatprep.subr.mxu0 0.0
        %901 = vmatpush1.msra.mxu0 0.0
        %902 = vmatprep.subr.mxu0 0.0
        %903 = vmatpush1.msra.mxu0 0.0
        %904 = vmatprep.mubr.f32.mxu0 0.0
        %905 = vmatmul.mubr.f32.gmra.mrb[0].mxu0 %v713
        %v906 = vpop.f32.mrb[0].mxu0
        %v907 = vadd.f32 %v802, %v906
        %v908 = vpop.f32.mrb[0].mxu0
        %909 = vmatprep.mubr.f32.mxu0 0.0
        %910 = vmatmul.mubr.f32.gmra.mrb[0].mxu0 %v716
        %v911 = vpop.f32.mrb[0].mxu0
        %v912 = vadd.f32 %v807, %v911
        %v913 = vpop.f32.mrb[0].mxu0
        %914 = vmatprep.mubr.f32.mxu0 0.0
        %915 = vmatmul.mubr.f32.gmra.mrb[0].mxu0 %v719
        %v916 = vpop.f32.mrb[0].mxu0
        %v917 = vadd.f32 %v812, %v916
        %v918 = vpop.f32.mrb[0].mxu0
        %919 = vmatprep.mubr.f32.mxu0 0.0
        %920 = vmatmul.mubr.f32.gmra.mrb[0].mxu0 %v722
        %v921 = vpop.f32.mrb[0].mxu0
        %v922 = vadd.f32 %v817, %v921
        %v923 = vpop.f32.mrb[0].mxu0
        %924 = vmatprep.mubr.f32.mxu0 0.0
        %925 = vmatmul.mubr.f32.gmra.mrb[0].mxu0 %v725
        %v926 = vpop.f32.mrb[0].mxu0
        %v927 = vadd.f32 %v822, %v926
        %v928 = vpop.f32.mrb[0].mxu0
        %929 = vmatprep.mubr.f32.mxu0 0.0
        %930 = vmatmul.mubr.f32.gmra.mrb[0].mxu0 %v728
        %v931 = vpop.f32.mrb[0].mxu0
        %v932 = vadd.f32 %v827, %v931
        %v933 = vpop.f32.mrb[0].mxu0
        %934 = vmatprep.mubr.f32.mxu0 0.0
        %935 = vmatmul.mubr.f32.gmra.mrb[0].mxu0 %v731
        %v936 = vpop.f32.mrb[0].mxu0
        %v937 = vadd.f32 %v832, %v936
        %v938 = vpop.f32.mrb[0].mxu0
        %939 = vmatprep.mubr.f32.mxu0 0.0
        %940 = vmatmul.mubr.f32.gmra.mrb[0].mxu0 %v734
        %v941 = vpop.f32.mrb[0].mxu0
        %v942 = vadd.f32 %v837, %v941
        %v943 = vpop.f32.mrb[0].mxu0
        %944 = vdwg.mxu0
        %v945 = vrsqrt.pop %v552
        %v946 = vmul.f32 %v552, %v945
        %vm947 = vcmp.eq.f32.partialorder %v552, inf
        %v948 = vsel %vm947, %v552, %v946
        %vm949 = vcmp.eq.f32.partialorder %v552, 0.0
        %v950 = vand.u32 %v552, 2147483648
        %v951 = vsel %vm949, %v950, %v948
        %v952 = vrsqrt.pop %v557
        %v953 = vmul.f32 %v557, %v952
        %vm954 = vcmp.eq.f32.partialorder %v557, inf
        %v955 = vsel %vm954, %v557, %v953
        %vm956 = vcmp.eq.f32.partialorder %v557, 0.0
        %v957 = vand.u32 %v557, 2147483648
        %v958 = vsel %vm956, %v957, %v955
        %v959 = vrsqrt.pop %v562
        %v960 = vmul.f32 %v562, %v959
        %vm961 = vcmp.eq.f32.partialorder %v562, inf
        %v962 = vsel %vm961, %v562, %v960
        %vm963 = vcmp.eq.f32.partialorder %v562, 0.0
        %v964 = vand.u32 %v562, 2147483648
        %v965 = vsel %vm963, %v964, %v962
        %v966 = vrsqrt.pop %v567
        %v967 = vmul.f32 %v567, %v966
        %vm968 = vcmp.eq.f32.partialorder %v567, inf
        %v969 = vsel %vm968, %v567, %v967
        %vm970 = vcmp.eq.f32.partialorder %v567, 0.0
        %v971 = vand.u32 %v567, 2147483648
        %v972 = vsel %vm970, %v971, %v969
        %v973 = vrsqrt.pop %v572
        %v974 = vmul.f32 %v572, %v973
        %vm975 = vcmp.eq.f32.partialorder %v572, inf
        %v976 = vsel %vm975, %v572, %v974
        %vm977 = vcmp.eq.f32.partialorder %v572, 0.0
        %v978 = vand.u32 %v572, 2147483648
        %v979 = vsel %vm977, %v978, %v976
        %v980 = vrsqrt.pop %v577
        %v981 = vmul.f32 %v577, %v980
        %vm982 = vcmp.eq.f32.partialorder %v577, inf
        %v983 = vsel %vm982, %v577, %v981
        %vm984 = vcmp.eq.f32.partialorder %v577, 0.0
        %v985 = vand.u32 %v577, 2147483648
        %v986 = vsel %vm984, %v985, %v983
        %v987 = vrsqrt.pop %v582
        %v988 = vmul.f32 %v582, %v987
        %vm989 = vcmp.eq.f32.partialorder %v582, inf
        %v990 = vsel %vm989, %v582, %v988
        %vm991 = vcmp.eq.f32.partialorder %v582, 0.0
        %v992 = vand.u32 %v582, 2147483648
        %v993 = vsel %vm991, %v992, %v990
        %v994 = vrsqrt.pop %v587
        %v995 = vmul.f32 %v587, %v994
        %vm996 = vcmp.eq.f32.partialorder %v587, inf
        %v997 = vsel %vm996, %v587, %v995
        %vm998 = vcmp.eq.f32.partialorder %v587, 0.0
        %v999 = vand.u32 %v587, 2147483648
        %v1000 = vsel %vm998, %v999, %v997
        %v1001 = vadd.f32 %v951, 0.001
        %v1002 = vadd.f32 %v958, 0.001
        %v1003 = vadd.f32 %v965, 0.001
        %v1004 = vadd.f32 %v972, 0.001
        %v1005 = vadd.f32 %v979, 0.001
        %v1006 = vadd.f32 %v986, 0.001
        %v1007 = vadd.f32 %v993, 0.001
        %v1008 = vadd.f32 %v1000, 0.001
        %v1009 = vrcp.pop %v1001
        %v1010 = vrcp.pop %v1002
        %v1011 = vrcp.pop %v1003
        %v1012 = vrcp.pop %v1004
        %v1013 = vrcp.pop %v1005
        %v1014 = vrcp.pop %v1006
        %v1015 = vrcp.pop %v1007
        %v1016 = vrcp.pop %v1008
        %v1017 = vmul.f32 %v1009, %v1009
        %v1018 = vmul.f32 %v1010, %v1010
        %v1019 = vmul.f32 %v1011, %v1011
        %v1020 = vmul.f32 %v1012, %v1012
        %v1021 = vmul.f32 %v1013, %v1013
        %v1022 = vmul.f32 %v1014, %v1014
        %v1023 = vmul.f32 %v1015, %v1015
        %v1024 = vmul.f32 %v1016, %v1016
        %v1025 = vmul.f32 %v673, %v1017
        %v1026 = vmul.f32 %v678, %v1018
        %v1027 = vmul.f32 %v683, %v1019
        %v1028 = vmul.f32 %v688, %v1020
        %v1029 = vmul.f32 %v693, %v1021
        %v1030 = vmul.f32 %v698, %v1022
        %v1031 = vmul.f32 %v703, %v1023
        %v1032 = vmul.f32 %v708, %v1024
        %v1033 = vmul.f32 %v552, %v1017
        %v1034 = vmul.f32 %v557, %v1018
        %v1035 = vmul.f32 %v562, %v1019
        %v1036 = vmul.f32 %v567, %v1020
        %v1037 = vmul.f32 %v572, %v1021
        %v1038 = vmul.f32 %v577, %v1022
        %v1039 = vmul.f32 %v582, %v1023
        %v1040 = vmul.f32 %v587, %v1024
        %v1041 = vmul.f32 %v907, -0.5
        %v1042 = vmul.f32 %v912, -0.5
        %v1043 = vmul.f32 %v917, -0.5
        %v1044 = vmul.f32 %v922, -0.5
        %v1045 = vmul.f32 %v927, -0.5
        %v1046 = vmul.f32 %v932, -0.5
        %v1047 = vmul.f32 %v937, -0.5
        %v1048 = vmul.f32 %v942, -0.5
        %v1049 = vmul.f32 %v1041, 1.442695
        %v1050 = vpow.pop %v1049
        %v1051 = vmul.f32 %v1042, 1.442695
        %v1052 = vpow.pop %v1051
        %v1053 = vmul.f32 %v1043, 1.442695
        %v1054 = vpow.pop %v1053
        %v1055 = vmul.f32 %v1044, 1.442695
        %v1056 = vpow.pop %v1055
        %v1057 = vmul.f32 %v1045, 1.442695
        %v1058 = vpow.pop %v1057
        %v1059 = vmul.f32 %v1046, 1.442695
        %v1060 = vpow.pop %v1059
        %v1061 = vmul.f32 %v1047, 1.442695
        %v1062 = vpow.pop %v1061
        %v1063 = vmul.f32 %v1048, 1.442695
        %v1064 = vpow.pop %v1063
        %v1065 = vsub.f32 1.0, %v1050
        %v1066 = vsub.f32 1.0, %v1052
        %v1067 = vsub.f32 1.0, %v1054
        %v1068 = vsub.f32 1.0, %v1056
        %v1069 = vsub.f32 1.0, %v1058
        %v1070 = vsub.f32 1.0, %v1060
        %v1071 = vsub.f32 1.0, %v1062
        %v1072 = vsub.f32 1.0, %v1064
        %v1073 = vmul.f32 %v1065, %v1065
        %v1074 = vmul.f32 %v1066, %v1066
        %v1075 = vmul.f32 %v1067, %v1067
        %v1076 = vmul.f32 %v1068, %v1068
        %v1077 = vmul.f32 %v1069, %v1069
        %v1078 = vmul.f32 %v1070, %v1070
        %v1079 = vmul.f32 %v1071, %v1071
        %v1080 = vmul.f32 %v1072, %v1072
        %v1081 = vadd.f32 %v1025, %v1026
        %v1082 = vadd.f32 %v1081, %v1027
        %v1083 = vadd.f32 %v1082, %v1028
        %v1084 = vadd.f32 %v1083, %v1029
        %v1085 = vadd.f32 %v1084, %v1030
        %v1086 = vadd.f32 %v1085, %v1031
        %v1087 = vadd.f32 %v1086, %v1032
        %v1088 = vrot.slane %v1087, 4
        %v1089 = vadd.f32 %v1087, %v1088
        %v1090 = vrot.slane %v1089, 2
        %v1091 = vadd.f32 %v1089, %v1090
        %v1092 = vrot.slane %v1091, 1
        %v1093 = vadd.f32 %v1091, %v1092
        %v1094 = vadd.f32 %v1073, %v1074
        %v1095 = vadd.f32 %v1094, %v1075
        %v1096 = vadd.f32 %v1095, %v1076
        %v1097 = vadd.f32 %v1096, %v1077
        %v1098 = vadd.f32 %v1097, %v1078
        %v1099 = vadd.f32 %v1098, %v1079
        %v1100 = vadd.f32 %v1099, %v1080
        %v1101 = vrot.slane %v1100, 4
        %v1102 = vadd.f32 %v1100, %v1101
        %v1103 = vrot.slane %v1102, 2
        %v1104 = vadd.f32 %v1102, %v1103
        %v1105 = vrot.slane %v1104, 1
        %v1106 = vadd.f32 %v1104, %v1105
        %v1107 = vadd.f32 %v1033, %v1034
        %v1108 = vadd.f32 %v1107, %v1035
        %v1109 = vadd.f32 %v1108, %v1036
        %v1110 = vadd.f32 %v1109, %v1037
        %v1111 = vadd.f32 %v1110, %v1038
        %v1112 = vadd.f32 %v1111, %v1039
        %v1113 = vadd.f32 %v1112, %v1040
        %v1114 = vrot.slane %v1113, 4
        %v1115 = vadd.f32 %v1113, %v1114
        %v1116 = vrot.slane %v1115, 2
        %v1117 = vadd.f32 %v1115, %v1116
        %v1118 = vrot.slane %v1117, 1
        %v1119 = vadd.f32 %v1117, %v1118
        %v1120 = vlaneseq
        %v1121 = vshrl.u32 %v1120, 7
        %vm1122 = vcmp.eq.s32.totalorder %v1121, 0
        %v1123 = vsel %vm1122, %v1093, 0.0
        %vm1124 = vcmp.eq.s32.totalorder %v1121, 1
        %v1125 = vsel %vm1124, %v1106, %v1123
        %vm1126 = vcmp.eq.s32.totalorder %v1121, 2
        %v1127 = vsel %vm1126, %v1119, %v1125
        %1128 = vst [vmem:[%s315] sm:$0xff] %v1127
        %vm1129 = vcmp.gt.f32.partialorder %v907, 0.1
        %vm1130 = vcmp.gt.f32.partialorder %v912, 0.1
        %vm1131 = vcmp.gt.f32.partialorder %v917, 0.1
        %vm1132 = vcmp.gt.f32.partialorder %v922, 0.1
        %vm1133 = vcmp.gt.f32.partialorder %v927, 0.1
        %vm1134 = vcmp.gt.f32.partialorder %v932, 0.1
        %vm1135 = vcmp.gt.f32.partialorder %v937, 0.1
        %vm1136 = vcmp.gt.f32.partialorder %v942, 0.1
        %v1137 = vsel %vm1129, 1, 0
        %v1138 = vsel %vm1130, 1, 0
        %v1139 = vsel %vm1131, 1, 0
        %v1140 = vsel %vm1132, 1, 0
        %v1141 = vsel %vm1133, 1, 0
        %v1142 = vsel %vm1134, 1, 0
        %v1143 = vsel %vm1135, 1, 0
        %v1144 = vsel %vm1136, 1, 0
        %vm1145 = vcmp.gt.f32.partialorder %v907, 0.5
        %vm1146 = vcmp.gt.f32.partialorder %v912, 0.5
        %vm1147 = vcmp.gt.f32.partialorder %v917, 0.5
        %vm1148 = vcmp.gt.f32.partialorder %v922, 0.5
        %vm1149 = vcmp.gt.f32.partialorder %v927, 0.5
        %vm1150 = vcmp.gt.f32.partialorder %v932, 0.5
        %vm1151 = vcmp.gt.f32.partialorder %v937, 0.5
        %vm1152 = vcmp.gt.f32.partialorder %v942, 0.5
        %v1153 = vsel %vm1145, 1, 0
        %v1154 = vsel %vm1146, 1, 0
        %v1155 = vsel %vm1147, 1, 0
        %v1156 = vsel %vm1148, 1, 0
        %v1157 = vsel %vm1149, 1, 0
        %v1158 = vsel %vm1150, 1, 0
        %v1159 = vsel %vm1151, 1, 0
        %v1160 = vsel %vm1152, 1, 0
        %v1161 = vadd.s32 %v1137, %v1153
        %v1162 = vadd.s32 %v1138, %v1154
        %v1163 = vadd.s32 %v1139, %v1155
        %v1164 = vadd.s32 %v1140, %v1156
        %v1165 = vadd.s32 %v1141, %v1157
        %v1166 = vadd.s32 %v1142, %v1158
        %v1167 = vadd.s32 %v1143, %v1159
        %v1168 = vadd.s32 %v1144, %v1160
        %vm1169 = vcmp.gt.f32.partialorder %v907, 1.0
        %vm1170 = vcmp.gt.f32.partialorder %v912, 1.0
        %vm1171 = vcmp.gt.f32.partialorder %v917, 1.0
        %vm1172 = vcmp.gt.f32.partialorder %v922, 1.0
        %vm1173 = vcmp.gt.f32.partialorder %v927, 1.0
        %vm1174 = vcmp.gt.f32.partialorder %v932, 1.0
        %vm1175 = vcmp.gt.f32.partialorder %v937, 1.0
        %vm1176 = vcmp.gt.f32.partialorder %v942, 1.0
        %v1177 = vsel %vm1169, 1, 0
        %v1178 = vsel %vm1170, 1, 0
        %v1179 = vsel %vm1171, 1, 0
        %v1180 = vsel %vm1172, 1, 0
        %v1181 = vsel %vm1173, 1, 0
        %v1182 = vsel %vm1174, 1, 0
        %v1183 = vsel %vm1175, 1, 0
        %v1184 = vsel %vm1176, 1, 0
        %v1185 = vadd.s32 %v1161, %v1177
        %v1186 = vadd.s32 %v1162, %v1178
        %v1187 = vadd.s32 %v1163, %v1179
        %v1188 = vadd.s32 %v1164, %v1180
        %v1189 = vadd.s32 %v1165, %v1181
        %v1190 = vadd.s32 %v1166, %v1182
        %v1191 = vadd.s32 %v1167, %v1183
        %v1192 = vadd.s32 %v1168, %v1184
        %v1193 = vpack.c.b16 %v1186, %v1185
        %v1194 = vpack.c.b16 %v1188, %v1187
        %v1195 = vpack.c.b8 %v1194, %v1193
        %v1196 = vpack.c.b16 %v1190, %v1189
        %v1197 = vpack.c.b16 %v1192, %v1191
        %v1198 = vpack.c.b8 %v1197, %v1196
        %1199 = vst [vmem:[%s290] sm:$0xff] %v1195
        %1200 = vst [vmem:[%s290 + $0x8] sm:$0xff] %v1198
        %p1201 = scmp.lt.s32.totalorder %s21, 1
        %s1202 = scalar_select %p1201, %s21, 1
        %s1203 = smul.addr %s1202, 8
        %s1204 = scalar_lea.vmem %s5, %s1203
        %s1205 = sand.u32 %s175, 1
        %s1206 = scalar_lea.sflag [#allocation3], %s1205
        %s1207 = sand.u32 %s175, 1
        %s1208 = smul.addr %s1207, 16
        %s1209 = scalar_lea.vmem [#allocation2], %s1208
        // Predicated region
        $region41: #{_device_forward.1} parent=39 // pred_check
          %p1210 = pneg %p159
        $region42: #{_device_forward.1} parent=39 // pred_check_branch
          %1212 = sbr.rel (%p1210) target = $region44
        $region43: #{_device_forward.1} parent=39 // pred_region
          _
        $region44: #{_device_forward.1} parent=39 // pred_fallthru
          _
        // Predicated region
        $region45: #{_device_forward.1} parent=39 // pred_check
          %p1213 = pneg %p185
        $region46: #{_device_forward.1} parent=39 // pred_check_branch
          %1215 = sbr.rel (%p1213) target = $region48
        $region47: #{_device_forward.1} parent=39 // pred_region
          %s1216 = smul.u32 2, %s21
          %s1218 = ssub.s32 256, 256
          %1219 = vsyncadd %s1206, %s1218
          %s1220 = smul.addr %s1216, 128
          %s1221 = scalar_lea.hbm %s6, %s1220
          %s1222 = sshll.u32 %s1209, 4
          %s1223 = int_to_ptr.vmem [resolvable:$true] %s1222
          %1228 = dma.vmem_to_hbm [thread:$0]  %s1223, 256, %s1221, %s1206, 128, 128, 8
        $region48: #{_device_forward.1} parent=39 // pred_fallthru
          _
      $region40: #{_device_forward.1} parent=5 // pred_fallthru
        _
      %p1229 = scmp.le.s32.totalorder 2, %s16
      // Predicated region
      $region49: #{_device_forward.1} parent=5 // pred_check
        %p1230 = pneg %p1229
      $region50: #{_device_forward.1} parent=5 // pred_check_branch
        %1232 = sbr.rel (%p1230) target = $region52
      $region51: #{_device_forward.1} parent=5 // pred_region
        %s1233 = ssub.s32 %s16, 2
        // Predicated region
        $region53: #{_device_forward.1} parent=51 // pred_check
          %p1234 = pneg %p165
        $region54: #{_device_forward.1} parent=51 // pred_check_branch
          %1236 = sbr.rel (%p1234) target = $region56
        $region55: #{_device_forward.1} parent=51 // pred_region
          %p1237 = scmp.lt.s32.totalorder %s22, 1
          %s1238 = scalar_select %p1237, %s22, 1
          %s1239 = smul.addr %s1238, 8
          %s1240 = scalar_lea.vmem %s5, %s1239
        $region56: #{_device_forward.1} parent=51 // pred_fallthru
          _
        // Predicated region
        $region57: #{_device_forward.1} parent=51 // pred_check
          %p1241 = pneg %p191
        $region58: #{_device_forward.1} parent=51 // pred_check_branch
          %1243 = sbr.rel (%p1241) target = $region60
        $region59: #{_device_forward.1} parent=51 // pred_region
          %s1244 = sand.u32 %s176, 1
          %s1245 = scalar_lea.sflag [#allocation3], %s1244
          %s1246 = sand.u32 %s176, 1
          %s1247 = smul.addr %s1246, 16
          %s1248 = scalar_lea.vmem [#allocation2], %s1247
          %1249 = dma.done %s1245, 256
        $region60: #{_device_forward.1} parent=51 // pred_fallthru
          _
      $region52: #{_device_forward.1} parent=5 // pred_fallthru
        _
    $region6: #{_device_forward.1} parent=1 // loop_footer
      %s20 = sadd.s32 1, %s16
    $region7: #{_device_forward.1} parent=1 // loop_footer_branch
      %15 = sbr.rel target = $region3
    $region8: #{_device_forward.1} parent=1 // loop_exit
      _
    %1250 = vsyncpa [#allocation3], 1
    %s1251 = scalar_lea.sflag [#allocation3], 1
    %1252 = vsyncpa %s1251, 1

</llo_original>
